<compile_context>
chip_gen: v7x
topology: tpu7x:2x2x1
jax: 0.10.0
libtpu: 0.0.40
codegen_flags: <defaults>
</compile_context>

<pallas_src>
import functools

import jax
import jax.numpy as jnp
from jax.experimental import pallas as pl
from jax.experimental.pallas import tpu as pltpu


def _round_up(n: int, m: int) -> int:
    return ((n + m - 1) // m) * m


def _activation(z, prediction_type: str, approx: bool):
    """f32 epilogue. exp goes to the EUP; reciprocal is approx only on the
    bf16 fast path (exact division on the fidelity path)."""
    if prediction_type == "multilabel":
        if approx:
            return pl.reciprocal(1.0 + jnp.exp(-z), approx=True)
        return 1.0 / (1.0 + jnp.exp(-z))
    # multiclass: softmax over labels (torch Softmax on a 2-D input -> dim=1)
    m = jnp.max(z, axis=-1, keepdims=True)
    e = jnp.exp(z - m)
    s = jnp.sum(e, axis=-1, keepdims=True)
    if approx:
        return e * pl.reciprocal(s, approx=True)
    return e / s


def _proj_kernel(x_ref, w_ref, b_ref, o_ref, *,
                 prediction_type: str, single_k: bool, approx_recip: bool):
    # x_ref: (TB, TF) f32 ; w_ref: (TF, TN) mm_dtype ; b_ref: (1, TN) f32
    # o_ref: (TB, TN) f32.  When nk > 1 the output block is resident across the
    # k axis and doubles as the f32 accumulator (no extra scratch).
    x = x_ref[...]
    if x.dtype != w_ref.dtype:
        x = x.astype(w_ref.dtype)          # in-kernel cast: wrapper stays single-pass
    part = jnp.dot(x, w_ref[...], preferred_element_type=jnp.float32)

    if single_k:
        o_ref[...] = _activation(part + b_ref[...], prediction_type,
                                 approx_recip).astype(o_ref.dtype)
    else:
        k = pl.program_id(2)

        @pl.when(k == 0)
        def _():
            o_ref[...] = part

        @pl.when(k != 0)
        def _():
            o_ref[...] += part

        @pl.when(k == pl.num_programs(2) - 1)
        def _():
            o_ref[...] = _activation(o_ref[...] + b_ref[...], prediction_type,
                                     approx_recip).astype(o_ref.dtype)


def prepare_projection_params(
    weight,                 # (nlabels, nfeatures) -- torch nn.Linear layout
    bias,                   # (nlabels,)
    prediction_type: str,
    *,
    use_bf16: bool = True,
    feature_tile: int = 512,               # reduction tile when W is not resident
    label_tile: int = 2048,                 # N tile (multilabel only), mult. of 128
    w_resident_bytes: int = 16 * 1024 * 1024,   # keep W un-tiled on K when <= this
):
    """One-time weight prep: transpose, lane-pad labels, pad features, cast MXU
    operands.  Keeps weight.T / padding out of the per-call hot path."""
    if prediction_type not in ("multilabel", "multiclass"):
        raise ValueError(f"Unknown prediction_type {prediction_type}")
    L, F = weight.shape
    mm_dtype = jnp.bfloat16 if use_bf16 else jnp.float32
    itemsize = jnp.dtype(mm_dtype).itemsize

    # ---- label (N) axis: lane-dense, 128-aligned ---------------------------
    Lp = _round_up(L, 128)
    if prediction_type == "multiclass" or Lp <= label_tile:
        # softmax reduces over labels -> whole label axis in a single block.
        # TODO(synk): online-softmax label tiling for very large multiclass nlabels.
        TN = Lp
    else:
        assert label_tile % 128 == 0
        TN = label_tile
        Lp = _round_up(L, TN)

    # ---- feature (K) axis: W fully VMEM-resident when it fits --------------
    if F * TN * itemsize <= w_resident_bytes:
        TF, Fp = F, F                        # single reduction step, nk == 1
    else:
        assert feature_tile % 128 == 0
        TF = feature_tile
        Fp = _round_up(F, TF)

    w_t = jnp.asarray(weight, jnp.float32).T                    # (F, L)
    w_t = jnp.pad(w_t, ((0, Fp - F), (0, Lp - L)))               # zero pad
    # Padded label columns: bias 0 is fine for sigmoid (sliced off afterwards);
    # for softmax they must be a huge negative logit so exp(pad - max) == 0.
    pad_bias = -1e30 if prediction_type == "multiclass" else 0.0
    b = jnp.pad(jnp.asarray(bias, jnp.float32), (0, Lp - L),
                constant_values=pad_bias).reshape(1, Lp)
    w_t = w_t.astype(mm_dtype)

    return dict(w_t=w_t, b=b, nlabels=L, nfeatures=F,
                Fp=Fp, TF=TF, Lp=Lp, TN=TN,
                prediction_type=prediction_type, mm_dtype=mm_dtype,
                approx_recip=bool(use_bf16))


def _vmem_budget_bytes() -> int:
    # Per-generation cap: leave headroom for Mosaic internal scratch (critical
    # on v7x where physical VMEM is only 64 MiB/TC), but allow >64 MiB on
    # v5e/v6e (128 MiB physical) so fat tiles are not artificially blocked.
    try:
        phys = int(getattr(pltpu.get_tpu_info(), "vmem_capacity_bytes",
                           64 * 1024 * 1024))
    except Exception:
        phys = 64 * 1024 * 1024
    return max(32 * 1024 * 1024, min(phys - 16 * 1024 * 1024, 100 * 1024 * 1024))


def random_projection_prediction(x, params, *, batch_tile: int = 1024):
    """x: (B, nfeatures) float32. Returns (B, nlabels) float32 predictions."""
    pt = params["prediction_type"]
    F, Fp, TF = params["nfeatures"], params["Fp"], params["TF"]
    L, Lp, TN = params["nlabels"], params["Lp"], params["TN"]
    mm_dtype = params["mm_dtype"]
    approx = params["approx_recip"]

    B = x.shape[0]
    assert x.shape[1] == F
    # Never split (or pad) a batch that fits a single tile; otherwise fat tiles
    # amortize the ~0.35us per-grid-step overhead.
    if B <= batch_tile:
        TB, Bp = B, B
    else:
        assert batch_tile % 8 == 0
        TB = batch_tile
        Bp = _round_up(B, TB)

    # x stays f32 here; the cast to the MXU dtype happens per-tile in-kernel.
    x_p = jnp.asarray(x, jnp.float32)
    if Bp != B or Fp != F:
        x_p = jnp.pad(x_p, ((0, Bp - B), (0, Fp - F)))

    nb, nj, nk = Bp // TB, Lp // TN, Fp // TF
    if pt == "multiclass":
        assert nj == 1, "softmax requires the whole label axis in one block"

    in_itemsize = jnp.dtype(mm_dtype).itemsize
    est = (2 * TB * TF * 4              # x blocks (f32, double-buffered)
           + TB * TF * in_itemsize      # in-kernel cast temp
           + 2 * TF * TN * in_itemsize  # W blocks
           + 2 * TB * TN * 4            # out/acc blocks (f32)
           + 2 * TN * 4)                # bias
    vmem_limit = int(min(_vmem_budget_bytes(),
                         max(32 * 1024 * 1024, 2 * est)))

    kernel = functools.partial(_proj_kernel, prediction_type=pt,
                               single_k=(nk == 1), approx_recip=approx)

    out = pl.pallas_call(
        kernel,
        out_shape=jax.ShapeDtypeStruct((Bp, Lp), jnp.float32),
        grid_spec=pltpu.PrefetchScalarGridSpec(
            num_scalar_prefetch=0,
            grid=(nb, nj, nk),          # batch, labels (both parallel), features (reduce)
            in_specs=[
                pl.BlockSpec((TB, TF), lambda i, j, k: (i, k)),   # x tile (f32)
                pl.BlockSpec((TF, TN), lambda i, j, k: (k, j)),   # W (resident if nk==nj==1)
                pl.BlockSpec((1, TN), lambda i, j, k: (0, j)),    # bias (f32)
            ],
            out_specs=pl.BlockSpec((TB, TN), lambda i, j, k: (i, j)),
        ),
        compiler_params=pltpu.CompilerParams(
            dimension_semantics=("parallel", "parallel", "arbitrary"),
            vmem_limit_bytes=vmem_limit,
        ),
    )(x_p, params["w_t"], params["b"])

    if Bp != B or Lp != L:
        out = out[:B, :L]
    return out


if __name__ == "__main__":
    key = jax.random.PRNGKey(0)

    # ---- Case 1: module-scale shapes; W fully VMEM-resident (nk == nj == 1) ----
    B, NFEAT, NLABELS = 64, 32, 16
    kx, kw, kb, k2 = jax.random.split(key, 4)
    x = jax.random.normal(kx, (B, NFEAT), dtype=jnp.float32)
    # torch.nn.init.normal_(weight): standard normal, shape (nlabels, nfeatures)
    weight = jax.random.normal(kw, (NLABELS, NFEAT), dtype=jnp.float32)
    # torch Linear default bias init: U(-1/sqrt(F), 1/sqrt(F))
    bound = float(NFEAT) ** -0.5
    bias = jax.random.uniform(kb, (NLABELS,), minval=-bound, maxval=bound,
                              dtype=jnp.float32)

    z_ref = jnp.dot(x, weight.T, precision=jax.lax.Precision.HIGHEST) + bias
    ref_ml = jax.nn.sigmoid(z_ref)
    ref_mc = jax.nn.softmax(z_ref, axis=-1)

    # bf16 MXU operands (default fast path; approx reciprocal on EUP).
    p_ml = prepare_projection_params(weight, bias, "multilabel")
    p_mc = prepare_projection_params(weight, bias, "multiclass")
    out_ml = random_projection_prediction(x, p_ml)
    out_mc = random_projection_prediction(x, p_mc)
    jax.block_until_ready((out_ml, out_mc))
    assert out_ml.shape == (B, NLABELS) and out_mc.shape == (B, NLABELS)
    assert jnp.allclose(out_ml, ref_ml, atol=5e-2), "sigmoid (bf16) mismatch"
    assert jnp.allclose(out_mc, ref_mc, atol=5e-2), "softmax (bf16) mismatch"

    # f32 MXU operands (fidelity path: exact division, no approx reciprocal).
    p_ml32 = prepare_projection_params(weight, bias, "multilabel", use_bf16=False)
    p_mc32 = prepare_projection_params(weight, bias, "multiclass", use_bf16=False)
    out_ml32 = random_projection_prediction(x, p_ml32)
    out_mc32 = random_projection_prediction(x, p_mc32)
    jax.block_until_ready((out_ml32, out_mc32))
    assert jnp.allclose(out_ml32, ref_ml, atol=1e-2), "sigmoid (f32) mismatch"
    assert jnp.allclose(out_mc32, ref_mc, atol=1e-2), "softmax (f32) mismatch"
    assert jnp.allclose(jnp.sum(out_mc32, axis=-1), 1.0, atol=1e-3)

    # ---- Case 2: exercises the K-accumulation path (nk > 1), batch/feature
    #      padding and multiple batch blocks (tiny tiles here are for coverage
    #      of those code paths only, not a performance configuration). ----
    B2, F2, L2 = 40, 300, 20
    kx2, kw2, kb2 = jax.random.split(k2, 3)
    x2 = jax.random.normal(kx2, (B2, F2), dtype=jnp.float32)
    w2 = jax.random.normal(kw2, (L2, F2), dtype=jnp.float32)
    bnd2 = float(F2) ** -0.5
    b2 = jax.random.uniform(kb2, (L2,), minval=-bnd2, maxval=bnd2,
                            dtype=jnp.float32)
    z2 = jnp.dot(x2, w2.T, precision=jax.lax.Precision.HIGHEST) + b2

    p2_ml = prepare_projection_params(w2, b2, "multilabel", use_bf16=False,
                                      feature_tile=128, w_resident_bytes=0)
    p2_mc = prepare_projection_params(w2, b2, "multiclass", use_bf16=False,
                                      feature_tile=128, w_resident_bytes=0)
    out2_ml = random_projection_prediction(x2, p2_ml, batch_tile=32)
    out2_mc = random_projection_prediction(x2, p2_mc, batch_tile=32)
    jax.block_until_ready((out2_ml, out2_mc))
    assert out2_ml.shape == (B2, L2) and out2_mc.shape == (B2, L2)
    assert jnp.allclose(out2_ml, jax.nn.sigmoid(z2), atol=2e-2), \
        "sigmoid (k-tiled) mismatch"
    assert jnp.allclose(out2_mc, jax.nn.softmax(z2, axis=-1), atol=2e-2), \
        "softmax (k-tiled) mismatch"
    assert jnp.allclose(jnp.sum(out2_mc, axis=-1), 1.0, atol=1e-3)

    print("KERNEL_OK")
</pallas_src>

<mosaic_0001>
module attributes {stable_mosaic.version = 11 : i64} {
  func.func @_proj_kernel(%arg0: i32, %arg1: i32, %arg2: i32, %arg3: memref<64x32xf32, #tpu.memory_space<vmem>>, %arg4: memref<32x128xbf16, #tpu.memory_space<vmem>>, %arg5: memref<1x128xf32, #tpu.memory_space<vmem>>, %arg6: memref<64x128xf32, #tpu.memory_space<vmem>>) attributes {dimension_semantics = [#tpu.dimension_semantics<parallel>, #tpu.dimension_semantics<parallel>, #tpu.dimension_semantics<arbitrary>], iteration_bounds = array<i64: 1, 1, 1>, scalar_prefetch = 0 : i64, scratch_operands = 0 : i64, tpu.core_type = #tpu.core_type<tc>, window_params = [{transform_indices = @transform_0, window_bounds = array<i64: 64, 32>}, {transform_indices = @transform_1, window_bounds = array<i64: 32, 128>}, {transform_indices = @transform_2, window_bounds = array<i64: 1, 128>}, {transform_indices = @transform_3, window_bounds = array<i64: 64, 128>}]} {
    %c0 = arith.constant 0 : index
    %c0_0 = arith.constant 0 : index
    %0 = vector.load %arg3[%c0, %c0_0] : memref<64x32xf32, #tpu.memory_space<vmem>>, vector<64x32xf32>
    %1 = arith.truncf %0 : vector<64x32xf32> to vector<64x32xbf16>
    %c0_1 = arith.constant 0 : index
    %c0_2 = arith.constant 0 : index
    %2 = vector.load %arg4[%c0_1, %c0_2] : memref<32x128xbf16, #tpu.memory_space<vmem>>, vector<32x128xbf16>
    %cst = arith.constant dense<0.000000e+00> : vector<64x128xf32>
    %3 = tpu.matmul %1, %2, %cst {dimension_numbers = #tpu.dot_dimension_numbers<[1], [0], [0], [1], [0, 0, 1, 1], [], []>} : vector<64x32xbf16>, vector<32x128xbf16>, vector<64x128xf32> -> vector<64x128xf32>
    %c0_3 = arith.constant 0 : index
    %c0_4 = arith.constant 0 : index
    %4 = vector.load %arg5[%c0_3, %c0_4] : memref<1x128xf32, #tpu.memory_space<vmem>>, vector<1x128xf32>
    %5 = vector.broadcast %4 : vector<1x128xf32> to vector<64x128xf32>
    %6 = arith.addf %3, %5 : vector<64x128xf32>
    %cst_5 = arith.constant 0.000000e+00 : f32
    %7 = vector.broadcast %cst_5 : f32 to vector<64x128xf32>
    %8 = arith.subf %7, %6 : vector<64x128xf32>
    %9 = math.exp %8 : vector<64x128xf32>
    %cst_6 = arith.constant 1.000000e+00 : f32
    %10 = vector.broadcast %cst_6 : f32 to vector<64x128xf32>
    %11 = arith.addf %10, %9 : vector<64x128xf32>
    %12 = tpu.reciprocal %11 {approx = true} : vector<64x128xf32> -> vector<64x128xf32>
    %c0_7 = arith.constant 0 : index
    %c0_8 = arith.constant 0 : index
    %13 = vector.load %arg6[%c0_7, %c0_8] : memref<64x128xf32, #tpu.memory_space<vmem>>, vector<64x128xf32>
    tpu.vector_store %arg6[%c0_7, %c0_8], %12 {strides = array<i32>} : memref<64x128xf32, #tpu.memory_space<vmem>>, vector<64x128xf32>,
    return
  }
  func.func @transform_0(%arg0: i32, %arg1: i32, %arg2: i32) -> (i32, i32) {
    %c0_i32 = arith.constant 0 : i32
    return %arg0, %arg2 : i32, i32
  }
  func.func @transform_1(%arg0: i32, %arg1: i32, %arg2: i32) -> (i32, i32) {
    %c0_i32 = arith.constant 0 : i32
    return %arg2, %arg1 : i32, i32
  }
  func.func @transform_2(%arg0: i32, %arg1: i32, %arg2: i32) -> (i32, i32) {
    %c0_i32 = arith.constant 0 : i32
    %c0_i32_0 = arith.constant 0 : i32
    return %c0_i32, %arg1 : i32, i32
  }
  func.func @transform_3(%arg0: i32, %arg1: i32, %arg2: i32) -> (i32, i32) {
    %c0_i32 = arith.constant 0 : i32
    return %arg0, %arg1 : i32, i32
  }
}

</mosaic_0001>

<llo_original>
// kernel: tpu_custom_call.1
$region0: #{tpu_custom_call.1}
  #allocation0 [shape = 'u32[]', space=smem, size = 0x4, offset = 0x4, fixed_abs, tag = 'smem constant byte address 0x4 - core index']
  #allocation1 [shape = 'u32[144,128]{1,0:T(1,128)}', space=vmem, size = 0x12000, scoped, tag = 'internal scratch']
  %s0 = inlined_call_operand.vmem [shape: f32[64,32], index: 0, kind: input, shape index: {}]
  %s1 = inlined_call_operand.vmem [shape: bf16[32,128], index: 1, kind: input, shape index: {}]
  %s2 = inlined_call_operand.vmem [shape: f32[1,128], index: 2, kind: input, shape index: {}]
  %s3 = inlined_call_operand.hbm [shape: f32[64,128], index: 3, kind: output, shape index: {}]
  %s4 = sld [smem:[#allocation0]]
  $region22: #{tpu_custom_call.1} parent=0
    _
  %s6 = ssub.s32 1, %s4
  %s7 = scalar_select 0, %s6, %s4
  $region1: #{tpu_custom_call.1} parent=0
    #allocation2 [shape = 'u8[32768]{0}', space=vmem, size = 0x8000, scoped, tag = 'output window, operand 0, single buffered']
    #allocation3 [shape = 's32[1]{0}', space=sflag, size = 0x4, scoped, tag = 'scoped memory for tpu_custom_call.1']
    %8 = vsyncpa [#allocation3], 0
    // Predicated region
    $region2: #{tpu_custom_call.1} parent=1 // pred_check
      _
    $region3: #{tpu_custom_call.1} parent=1 // pred_check_branch
      %10 = sbr.rel (0) target = $region5
    $region4: #{tpu_custom_call.1} parent=1 // pred_region
      _
    $region5: #{tpu_custom_call.1} parent=1 // pred_fallthru
      _
    // Predicated region
    $region6: #{tpu_custom_call.1} parent=1 // pred_check
      _
    $region7: #{tpu_custom_call.1} parent=1 // pred_check_branch
      %12 = sbr.rel (0) target = $region9
    $region8: #{tpu_custom_call.1} parent=1 // pred_region
      _
    $region9: #{tpu_custom_call.1} parent=1 // pred_fallthru
      _
    // Predicated region
    $region10: #{tpu_custom_call.1} parent=1 // pred_check
      _
    $region11: #{tpu_custom_call.1} parent=1 // pred_check_branch
      %14 = sbr.rel (0) target = $region13
    $region12: #{tpu_custom_call.1} parent=1 // pred_region
      _
    $region13: #{tpu_custom_call.1} parent=1 // pred_fallthru
      _
    %v16 = vld [vmem:[%s0] sm:$0xff]
    %v17 = vld [vmem:[%s0 + $0x8] sm:$0xff]
    %v18 = vld [vmem:[%s0 + $0x10] sm:$0xff]
    %v19 = vld [vmem:[%s0 + $0x18] sm:$0xff]
    %v20 = vld [vmem:[%s0 + $0x20] sm:$0xff]
    %v21 = vld [vmem:[%s0 + $0x28] sm:$0xff]
    %v22 = vld [vmem:[%s0 + $0x30] sm:$0xff]
    %v23 = vld [vmem:[%s0 + $0x38] sm:$0xff]
    %v24 = vpack.c.bf16 %v17, %v16
    %v25 = vpack.c.bf16 %v19, %v18
    %v26 = vpack.c.bf16 %v21, %v20
    %v27 = vpack.c.bf16 %v23, %v22
    %v28 = vld [vmem:[%s1] sm:$0xf]
    %v29 = vld [vmem:[%s1 + $0x4] sm:$0xf]
    %v30 = vld [vmem:[%s1 + $0x8] sm:$0xf]
    %v31 = vld [vmem:[%s1 + $0xc] sm:$0xf]
    %v32 = vld [vmem:[%s2] sm:$0x1]
    %v34 = vlaneseq
    %v35 = vshrl.u32 %v34, 7
    %v36 = vsub.s32 0, %v35
    %v37 = vrot.slane %v32, %v36
    %v43 = vunpack.c.l.b16 %v28
    %v44 = vunpack.c.l.b16 %v29
    %v45 = vunpack.c.l.b16 %v30
    %v46 = vunpack.c.l.b16 %v31
    %v47 = vpack.c.b16 %v44, %v43
    %v48 = vpack.c.b16 %v46, %v45
    %vm51 = vcmask 261120
    %v53 = vsel %vm51, %v24, 0
    %v56 = vsel %vm51, %v25, 0
    %v59 = vsel %vm51, %v26, 0
    %v62 = vsel %vm51, %v27, 0
    %64 = vmatprep.subr.bf16.mxu0 0
    %65 = vmatpush1.bf16.msra.mxu0 %v47
    %66 = vmatprep.subr.bf16.mxu0 0
    %67 = vmatpush1.bf16.msra.mxu0 %v48
    %68 = vmatprep.subr.bf16.mxu0 0
    %69 = vmatpush1.bf16.msra.mxu0 0
    %70 = vmatprep.subr.bf16.mxu0 0
    %71 = vmatpush1.bf16.msra.mxu0 0
    %72 = vmatprep.subr.bf16.mxu0 0
    %73 = vmatpush1.bf16.msra.mxu0 0
    %74 = vmatprep.subr.bf16.mxu0 0
    %75 = vmatpush1.bf16.msra.mxu0 0
    %76 = vmatprep.subr.bf16.mxu0 0
    %77 = vmatpush1.bf16.msra.mxu0 0
    %78 = vmatprep.subr.bf16.mxu0 0
    %79 = vmatpush1.bf16.msra.mxu0 0
    %80 = vmatprep.subr.bf16.mxu0 0
    %81 = vmatpush1.bf16.msra.mxu0 0
    %82 = vmatprep.subr.bf16.mxu0 0
    %83 = vmatpush1.bf16.msra.mxu0 0
    %84 = vmatprep.subr.bf16.mxu0 0
    %85 = vmatpush1.bf16.msra.mxu0 0
    %86 = vmatprep.subr.bf16.mxu0 0
    %87 = vmatpush1.bf16.msra.mxu0 0
    %88 = vmatprep.subr.bf16.mxu0 0
    %89 = vmatpush1.bf16.msra.mxu0 0
    %90 = vmatprep.subr.bf16.mxu0 0
    %91 = vmatpush1.bf16.msra.mxu0 0
    %92 = vmatprep.subr.bf16.mxu0 0
    %93 = vmatpush1.bf16.msra.mxu0 0
    %94 = vmatprep.subr.bf16.mxu0 0
    %95 = vmatpush1.bf16.msra.mxu0 0
    %96 = vmatprep.mubr.bf16.mxu0 0
    %97 = vmatmul.mubr.bf16.gmra.mrb[0].mxu0 %v53
    %v98 = vpop.f32.mrb[0].mxu0
    %v99 = vadd.f32 %v37, %v98
    %v100 = vpop.f32.mrb[0].mxu0
    %v101 = vpop.f32.mrb[0].mxu0
    %v102 = vadd.f32 %v37, %v101
    %v103 = vpop.f32.mrb[0].mxu0
    %104 = vmatprep.mubr.bf16.mxu0 0
    %105 = vmatmul.mubr.bf16.gmra.mrb[0].mxu0 %v56
    %v106 = vpop.f32.mrb[0].mxu0
    %v107 = vadd.f32 %v37, %v106
    %v108 = vpop.f32.mrb[0].mxu0
    %v109 = vpop.f32.mrb[0].mxu0
    %v110 = vadd.f32 %v37, %v109
    %v111 = vpop.f32.mrb[0].mxu0
    %112 = vmatprep.mubr.bf16.mxu0 0
    %113 = vmatmul.mubr.bf16.gmra.mrb[0].mxu0 %v59
    %v114 = vpop.f32.mrb[0].mxu0
    %v115 = vadd.f32 %v37, %v114
    %v116 = vpop.f32.mrb[0].mxu0
    %v117 = vpop.f32.mrb[0].mxu0
    %v118 = vadd.f32 %v37, %v117
    %v119 = vpop.f32.mrb[0].mxu0
    %120 = vmatprep.mubr.bf16.mxu0 0
    %121 = vmatmul.mubr.bf16.gmra.mrb[0].mxu0 %v62
    %v122 = vpop.f32.mrb[0].mxu0
    %v123 = vadd.f32 %v37, %v122
    %v124 = vpop.f32.mrb[0].mxu0
    %v125 = vpop.f32.mrb[0].mxu0
    %v126 = vadd.f32 %v37, %v125
    %v127 = vpop.f32.mrb[0].mxu0
    %128 = vdwg.mxu0
    %v129 = vsub.f32 0.0, %v99
    %v130 = vsub.f32 0.0, %v102
    %v131 = vsub.f32 0.0, %v107
    %v132 = vsub.f32 0.0, %v110
    %v133 = vsub.f32 0.0, %v115
    %v134 = vsub.f32 0.0, %v118
    %v135 = vsub.f32 0.0, %v123
    %v136 = vsub.f32 0.0, %v126
    %v137 = vmul.f32 %v129, 1.442695
    %v138 = vpow.pop %v137
    %v139 = vmul.f32 %v130, 1.442695
    %v140 = vpow.pop %v139
    %v141 = vmul.f32 %v131, 1.442695
    %v142 = vpow.pop %v141
    %v143 = vmul.f32 %v132, 1.442695
    %v144 = vpow.pop %v143
    %v145 = vmul.f32 %v133, 1.442695
    %v146 = vpow.pop %v145
    %v147 = vmul.f32 %v134, 1.442695
    %v148 = vpow.pop %v147
    %v149 = vmul.f32 %v135, 1.442695
    %v150 = vpow.pop %v149
    %v151 = vmul.f32 %v136, 1.442695
    %v152 = vpow.pop %v151
    %v153 = vadd.f32 %v138, 1.0
    %v154 = vadd.f32 %v140, 1.0
    %v155 = vadd.f32 %v142, 1.0
    %v156 = vadd.f32 %v144, 1.0
    %v157 = vadd.f32 %v146, 1.0
    %v158 = vadd.f32 %v148, 1.0
    %v159 = vadd.f32 %v150, 1.0
    %v160 = vadd.f32 %v152, 1.0
    %v161 = vrcp.pop %v153
    %v162 = vrcp.pop %v154
    %v163 = vrcp.pop %v155
    %v164 = vrcp.pop %v156
    %v165 = vrcp.pop %v157
    %v166 = vrcp.pop %v158
    %v167 = vrcp.pop %v159
    %v168 = vrcp.pop %v160
    %169 = vst [vmem:[#allocation2] sm:$0xff] %v161
    %170 = vst [vmem:[#allocation2 + $0x8] sm:$0xff] %v162
    %171 = vst [vmem:[#allocation2 + $0x10] sm:$0xff] %v163
    %172 = vst [vmem:[#allocation2 + $0x18] sm:$0xff] %v164
    %173 = vst [vmem:[#allocation2 + $0x20] sm:$0xff] %v165
    %174 = vst [vmem:[#allocation2 + $0x28] sm:$0xff] %v166
    %175 = vst [vmem:[#allocation2 + $0x30] sm:$0xff] %v167
    %176 = vst [vmem:[#allocation2 + $0x38] sm:$0xff] %v168
    // Predicated region
    $region14: #{tpu_custom_call.1} parent=1 // pred_check
      _
    $region15: #{tpu_custom_call.1} parent=1 // pred_check_branch
      %178 = sbr.rel (0) target = $region17
    $region16: #{tpu_custom_call.1} parent=1 // pred_region
      %s180 = ssub.s32 1024, 1024
      %181 = vsyncadd [#allocation3], %s180
      %s182 = sshll.u32 [#allocation2], 4
      %s183 = int_to_ptr.vmem [resolvable:$true] %s182
      %188 = dma.vmem_to_hbm [thread:$0]  %s183, 1024, %s3, [#allocation3], 128, 128, 8
    $region17: #{tpu_custom_call.1} parent=1 // pred_fallthru
      _
    // Predicated region
    $region18: #{tpu_custom_call.1} parent=1 // pred_check
      _
    $region19: #{tpu_custom_call.1} parent=1 // pred_check_branch
      %190 = sbr.rel (0) target = $region21
    $region20: #{tpu_custom_call.1} parent=1 // pred_region
      %191 = dma.done [#allocation3], 1024
    $region21: #{tpu_custom_call.1} parent=1 // pred_fallthru
      _
    %192 = vsyncpa [#allocation3], 1

</llo_original>
